<compile_context>
chip_gen: v6e
topology: v6e:2x2x1
jax: 0.10.0
libtpu: 0.0.40
codegen_flags: <defaults>
</compile_context>

<pallas_src>
import functools
import math

import jax
import jax.numpy as jnp
from jax.experimental import pallas as pl
from jax.experimental.pallas import tpu as pltpu


def _round_up(a: int, m: int) -> int:
    return (a + m - 1) // m * m


def nn_forward_kernel(v_valid, x_ref, w1t_ref, w2t_ref, out_ref, h_ref, m_ref):
    # x_ref:   [TB, Vp]  bf16 padded input rows (resident across vocab tiles)
    # w1t_ref: [Vp, Ep]  bf16 fc1 weight, pre-transposed + zero padded (single-buffered)
    # w2t_ref: [Ep, TV]  bf16 fc2 weight tile for this vocab step
    # out_ref: [TB, Vp]  f32 output row block (resident across vocab tiles)
    # h_ref:   [TB, Ep]  bf16 hidden scratch
    # m_ref:   [TB, 1]   f32 running max scratch
    k = pl.program_id(1)
    nk = pl.num_programs(1)
    tv = w2t_ref.shape[1]
    vp = out_ref.shape[1]

    @pl.when(k == 0)
    def _():
        # fc1 once per batch tile: h = x @ w1t (bf16 inputs, f32 MXU accumulation).
        h_ref[...] = jnp.dot(
            x_ref[...], w1t_ref[...], preferred_element_type=jnp.float32
        ).astype(h_ref.dtype)
        m_ref[...] = jnp.full_like(m_ref, -jnp.inf)

    # fc2 for this vocab tile (streamed w2t tile), stage raw logits into the
    # resident output block with a lane-dense (multiple-of-128) slab store.
    logits = jnp.dot(h_ref[...], w2t_ref[...], preferred_element_type=jnp.float32)
    m_ref[...] = jnp.maximum(m_ref[...], jnp.max(logits, axis=-1, keepdims=True))
    col = pl.multiple_of(k * tv, tv)
    out_ref[:, pl.ds(col, tv)] = logits.astype(out_ref.dtype)

    @pl.when(k == nk - 1)
    def _():
        z = out_ref[...]                       # [TB, Vp] raw logits
        m = m_ref[...]
        if v_valid != vp:                      # static guard: only when V % 128 != 0
            lane = jax.lax.broadcasted_iota(jnp.int32, z.shape, 1)
            z = jnp.where(lane < v_valid, z, -jnp.inf)
            # Recompute the max over valid lanes only (padded logits are exactly 0
            # and could otherwise dominate the running max).
            m = jnp.max(z, axis=-1, keepdims=True)
        # Numerically stable softmax (matches nn.Softmax(dim=-1)), all in f32.
        e = jnp.exp(z - m)
        denom = jnp.sum(e, axis=-1, keepdims=True)
        # Divide on the EUP; one Newton-Raphson step restores full f32 accuracy.
        r = pl.reciprocal(denom, approx=True)
        r = r * (2.0 - denom * r)
        out_ref[...] = (e * r).astype(out_ref.dtype)


def _maybe_single_buffered(shape, index_map):
    # Constant-index block: single-buffer it to halve its VMEM footprint.
    try:
        return pl.BlockSpec(shape, index_map, pipeline_mode=pl.Buffered(1))
    except (TypeError, AttributeError):
        return pl.BlockSpec(shape, index_map)


def nn_forward(x, w1, w2):
    """x: [B, V], w1: [E, V] (fc1.weight), w2: [V, E] (fc2.weight) -> [B, V] softmax probs."""
    B, V = x.shape
    E = w1.shape[0]
    assert w1.shape == (E, V) and w2.shape == (V, E)

    # Lane-dense padded shapes.
    Vp = _round_up(V, 128)
    Ep = _round_up(E, 128)

    # Batch tile: 256 for large B (v6e/v7x 256x256 MXU); otherwise aim for >= 2 batch
    # tiles so v7x's two TensorCores both get work on the "parallel" axis.
    if B >= 512:
        TB = 256
    elif B >= 16:
        TB = _round_up((B + 1) // 2, 8)
    else:
        TB = _round_up(max(B, 1), 8)
    # Cap TB so the per-batch-tile resident buffers (bf16 x row block double-buffered
    # + f32 logits/out row block) stay within a conservative VMEM budget (v7x: 64 MiB).
    row_budget = 24 << 20
    while TB > 8 and TB * Vp * (2 * 2 + 2 * 4) > row_budget:
        TB = max(8, _round_up(TB // 2, 8))
    Bp = _round_up(B, TB)

    # Vocab tile for the streamed fc2 weight (multiple of 128 lanes, divides Vp).
    TV = math.gcd(Vp, 512)

    # Pad + cast once in the wrapper (layout plumbing, not compute). Weights/input go
    # to bf16 for the MXU; accumulation and softmax stay f32.
    xp = jnp.zeros((Bp, Vp), jnp.bfloat16).at[:B, :V].set(x.astype(jnp.bfloat16))
    w1t = jnp.zeros((Vp, Ep), jnp.bfloat16).at[:V, :E].set(w1.T.astype(jnp.bfloat16))
    w2t = jnp.zeros((Ep, Vp), jnp.bfloat16).at[:E, :V].set(w2.T.astype(jnp.bfloat16))

    # VMEM budget derived from the actual buffers (don't rely on the default scoped limit).
    vmem_bytes = (
        2 * TB * Vp * 2        # x row block (bf16, double-buffered)
        + 1 * Vp * Ep * 2      # w1t (bf16, single-buffered)
        + 2 * Ep * TV * 2      # w2t tile (bf16, double-buffered)
        + 2 * TB * Vp * 4      # out row block (f32) + writeback buffer
        + TB * Ep * 2          # h scratch (bf16)
        + TB * 128 * 4         # m scratch (lane-padded)
    )
    vmem_limit = int(min(max(2 * vmem_bytes, 16 << 20), 64 << 20))

    cost = pl.CostEstimate(
        flops=4 * Bp * Vp * Ep,                       # fc1 + fc2 matmuls
        transcendentals=Bp * Vp,                      # exp in the softmax
        bytes_accessed=Bp * Vp * 2 + Vp * Ep * 2 + Ep * Vp * 2 + Bp * Vp * 4,
    )

    out = pl.pallas_call(
        functools.partial(nn_forward_kernel, V),
        out_shape=jax.ShapeDtypeStruct((Bp, Vp), jnp.float32),
        grid_spec=pltpu.PrefetchScalarGridSpec(
            num_scalar_prefetch=0,
            grid=(Bp // TB, Vp // TV),
            in_specs=[
                pl.BlockSpec((TB, Vp), lambda i, k: (i, 0)),        # x: batch-tiled, resident over vocab
                _maybe_single_buffered((Vp, Ep), lambda i, k: (0, 0)),  # w1t: constant -> single buffer
                pl.BlockSpec((Ep, TV), lambda i, k: (0, k)),        # w2t: streamed per vocab tile
            ],
            out_specs=pl.BlockSpec((TB, Vp), lambda i, k: (i, 0)),  # resident across vocab axis
            scratch_shapes=[
                pltpu.VMEM((TB, Ep), jnp.bfloat16),   # h
                pltpu.VMEM((TB, 1), jnp.float32),     # running max
            ],
        ),
        compiler_params=pltpu.CompilerParams(
            dimension_semantics=("parallel", "arbitrary"),
            vmem_limit_bytes=vmem_limit,
        ),
        cost_estimate=cost,
    )(xp, w1t, w2t)

    return out[:B, :V]


def nn_forward_ref(x, w1, w2):
    h = x @ w1.T
    logits = h @ w2.T
    return jax.nn.softmax(logits, axis=-1)


if __name__ == "__main__":
    n_embedding = 10
    vocab_size = 32
    batch = 8

    key = jax.random.PRNGKey(0)
    kx, k1, k2 = jax.random.split(key, 3)

    # Deterministic parameter init (shapes follow nn.Linear: [out_features, in_features]).
    bound1 = 1.0 / jnp.sqrt(vocab_size)
    bound2 = 1.0 / jnp.sqrt(n_embedding)
    w1 = jax.random.uniform(k1, (n_embedding, vocab_size), jnp.float32, -bound1, bound1)
    w2 = jax.random.uniform(k2, (vocab_size, n_embedding), jnp.float32, -bound2, bound2)

    # Input: batch of one-hot vectors over the vocabulary (typical word2vec input).
    ids = jax.random.randint(kx, (batch,), 0, vocab_size)
    x = jax.nn.one_hot(ids, vocab_size, dtype=jnp.float32)

    out = nn_forward(x, w1, w2)
    out = jax.block_until_ready(out)

    ref = nn_forward_ref(x, w1, w2)
    assert out.shape == (batch, vocab_size)
    # bf16 weights (f32 accumulation / f32 softmax) vs. the pure-f32 reference:
    # tolerance loosened accordingly (probabilities are O(1/V) here).
    assert jnp.allclose(out, ref, atol=2e-3, rtol=2e-2)
    assert jnp.allclose(jnp.sum(out, axis=-1), 1.0, atol=1e-5)

    print("KERNEL_OK")
</pallas_src>

<mosaic_0001>
module attributes {stable_mosaic.version = 11 : i64} {
  func.func @nn_forward_kernel(%arg0: i32, %arg1: i32, %arg2: memref<8x128xbf16, #tpu.memory_space<vmem>>, %arg3: memref<128x128xbf16, #tpu.memory_space<vmem>>, %arg4: memref<128x128xbf16, #tpu.memory_space<vmem>>, %arg5: memref<8x128xf32, #tpu.memory_space<vmem>>, %arg6: memref<8x128xbf16, #tpu.memory_space<vmem>>, %arg7: memref<8x1xf32, #tpu.memory_space<vmem>>) attributes {dimension_semantics = [#tpu.dimension_semantics<parallel>, #tpu.dimension_semantics<arbitrary>], iteration_bounds = array<i64: 1, 1>, scalar_prefetch = 0 : i64, scratch_operands = 2 : i64, tpu.core_type = #tpu.core_type<tc>, window_params = [{transform_indices = @transform_0, window_bounds = array<i64: 8, 128>}, {pipeline_mode = #tpu.pipeline_mode<synchronous>, transform_indices = @transform_1, window_bounds = array<i64: 128, 128>}, {transform_indices = @transform_2, window_bounds = array<i64: 128, 128>}, {transform_indices = @transform_3, window_bounds = array<i64: 8, 128>}]} {
    %c0_i32 = arith.constant 0 : i32
    %0 = arith.cmpi eq, %arg1, %c0_i32 : i32
    %1 = arith.extui %0 : i1 to i32
    %c0_i32_0 = arith.constant 0 : i32
    %2 = arith.cmpi ne, %1, %c0_i32_0 : i32
    scf.if %2 {
      %c0_12 = arith.constant 0 : index
      %c0_13 = arith.constant 0 : index
      %18 = vector.load %arg2[%c0_12, %c0_13] : memref<8x128xbf16, #tpu.memory_space<vmem>>, vector<8x128xbf16>
      %c0_14 = arith.constant 0 : index
      %c0_15 = arith.constant 0 : index
      %19 = vector.load %arg3[%c0_14, %c0_15] : memref<128x128xbf16, #tpu.memory_space<vmem>>, vector<128x128xbf16>
      %cst_16 = arith.constant dense<0.000000e+00> : vector<8x128xf32>
      %20 = tpu.matmul %18, %19, %cst_16 {dimension_numbers = #tpu.dot_dimension_numbers<[1], [0], [0], [1], [0, 0, 1, 1], [], []>} : vector<8x128xbf16>, vector<128x128xbf16>, vector<8x128xf32> -> vector<8x128xf32>
      %21 = arith.truncf %20 : vector<8x128xf32> to vector<8x128xbf16>
      %c0_17 = arith.constant 0 : index
      %c0_18 = arith.constant 0 : index
      %22 = vector.load %arg6[%c0_17, %c0_18] : memref<8x128xbf16, #tpu.memory_space<vmem>>, vector<8x128xbf16>
      tpu.vector_store %arg6[%c0_17, %c0_18], %21 {strides = array<i32>} : memref<8x128xbf16, #tpu.memory_space<vmem>>, vector<8x128xbf16>,
      %cst_19 = arith.constant 0xFF800000 : f32
      %23 = vector.broadcast %cst_19 : f32 to vector<8x1xf32>
      %c0_20 = arith.constant 0 : index
      %c0_21 = arith.constant 0 : index
      %24 = vector.load %arg7[%c0_20, %c0_21] : memref<8x1xf32, #tpu.memory_space<vmem>>, vector<8x1xf32>
      tpu.vector_store %arg7[%c0_20, %c0_21], %23 {strides = array<i32>} : memref<8x1xf32, #tpu.memory_space<vmem>>, vector<8x1xf32>,
    } else {
    }
    %c0 = arith.constant 0 : index
    %c0_1 = arith.constant 0 : index
    %3 = vector.load %arg6[%c0, %c0_1] : memref<8x128xbf16, #tpu.memory_space<vmem>>, vector<8x128xbf16>
    %c0_2 = arith.constant 0 : index
    %c0_3 = arith.constant 0 : index
    %4 = vector.load %arg4[%c0_2, %c0_3] : memref<128x128xbf16, #tpu.memory_space<vmem>>, vector<128x128xbf16>
    %cst = arith.constant dense<0.000000e+00> : vector<8x128xf32>
    %5 = tpu.matmul %3, %4, %cst {dimension_numbers = #tpu.dot_dimension_numbers<[1], [0], [0], [1], [0, 0, 1, 1], [], []>} : vector<8x128xbf16>, vector<128x128xbf16>, vector<8x128xf32> -> vector<8x128xf32>
    %c0_4 = arith.constant 0 : index
    %c0_5 = arith.constant 0 : index
    %6 = vector.load %arg7[%c0_4, %c0_5] : memref<8x1xf32, #tpu.memory_space<vmem>>, vector<8x1xf32>
    %cst_6 = arith.constant dense<0xFF800000> : vector<8xf32>
    %7 = vector.multi_reduction <maximumf>, %5, %cst_6 [1] : vector<8x128xf32> to vector<8xf32>
    %8 = vector.shape_cast %7 : vector<8xf32> to vector<8x1xf32>
    %9 = arith.maximumf %6, %8 : vector<8x1xf32>
    %c0_7 = arith.constant 0 : index
    %c0_8 = arith.constant 0 : index
    %10 = vector.load %arg7[%c0_7, %c0_8] : memref<8x1xf32, #tpu.memory_space<vmem>>, vector<8x1xf32>
    tpu.vector_store %arg7[%c0_7, %c0_8], %9 {strides = array<i32>} : memref<8x1xf32, #tpu.memory_space<vmem>>, vector<8x1xf32>,
    %c128_i32 = arith.constant 128 : i32
    %11 = arith.muli %arg1, %c128_i32 : i32
    %12 = tpu.assume_multiple %11, 128 : i32
    %c0_9 = arith.constant 0 : index
    %13 = arith.index_cast %12 : i32 to index
    %14 = vector.load %arg5[%c0_9, %13] : memref<8x128xf32, #tpu.memory_space<vmem>>, vector<8x128xf32>
    tpu.vector_store %arg5[%c0_9, %13], %5 {strides = array<i32>} : memref<8x128xf32, #tpu.memory_space<vmem>>, vector<8x128xf32>,
    %c0_i32_10 = arith.constant 0 : i32
    %15 = arith.cmpi eq, %arg1, %c0_i32_10 : i32
    %16 = arith.extui %15 : i1 to i32
    %c0_i32_11 = arith.constant 0 : i32
    %17 = arith.cmpi ne, %16, %c0_i32_11 : i32
    scf.if %17 {
      %c0_12 = arith.constant 0 : index
      %c0_13 = arith.constant 0 : index
      %18 = vector.load %arg5[%c0_12, %c0_13] : memref<8x128xf32, #tpu.memory_space<vmem>>, vector<8x128xf32>
      %19 = tpu.iota {dimensions = array<i32: 1>} : vector<8x128xi32>
      %c32_i32 = arith.constant 32 : i32
      %20 = vector.broadcast %c32_i32 : i32 to vector<8x128xi32>
      %21 = arith.cmpi slt, %19, %20 : vector<8x128xi32>
      %cst_14 = arith.constant 0xFF800000 : f32
      %22 = vector.broadcast %cst_14 : f32 to vector<8x128xf32>
      %23 = arith.select %21, %18, %22 : vector<8x128xi1>, vector<8x128xf32>
      %cst_15 = arith.constant dense<0xFF800000> : vector<8xf32>
      %24 = vector.multi_reduction <maximumf>, %23, %cst_15 [1] : vector<8x128xf32> to vector<8xf32>
      %25 = vector.shape_cast %24 : vector<8xf32> to vector<8x1xf32>
      %26 = vector.broadcast %25 : vector<8x1xf32> to vector<8x128xf32>
      %27 = arith.subf %23, %26 : vector<8x128xf32>
      %28 = math.exp %27 : vector<8x128xf32>
      %cst_16 = arith.constant dense<0.000000e+00> : vector<8xf32>
      %29 = vector.multi_reduction <add>, %28, %cst_16 [1] : vector<8x128xf32> to vector<8xf32>
      %30 = vector.shape_cast %29 : vector<8xf32> to vector<8x1xf32>
      %31 = tpu.reciprocal %30 {approx = true} : vector<8x1xf32> -> vector<8x1xf32>
      %32 = arith.mulf %30, %31 : vector<8x1xf32>
      %cst_17 = arith.constant 2.000000e+00 : f32
      %33 = vector.broadcast %cst_17 : f32 to vector<8x1xf32>
      %34 = arith.subf %33, %32 : vector<8x1xf32>
      %35 = arith.mulf %31, %34 : vector<8x1xf32>
      %36 = vector.broadcast %35 : vector<8x1xf32> to vector<8x128xf32>
      %37 = arith.mulf %28, %36 : vector<8x128xf32>
      %c0_18 = arith.constant 0 : index
      %c0_19 = arith.constant 0 : index
      %38 = vector.load %arg5[%c0_18, %c0_19] : memref<8x128xf32, #tpu.memory_space<vmem>>, vector<8x128xf32>
      tpu.vector_store %arg5[%c0_18, %c0_19], %37 {strides = array<i32>} : memref<8x128xf32, #tpu.memory_space<vmem>>, vector<8x128xf32>,
    } else {
    }
    return
  }
  func.func @transform_0(%arg0: i32, %arg1: i32) -> (i32, i32) {
    %c0_i32 = arith.constant 0 : i32
    %c0_i32_0 = arith.constant 0 : i32
    return %arg0, %c0_i32 : i32, i32
  }
  func.func @transform_1(%arg0: i32, %arg1: i32) -> (i32, i32) {
    %c0_i32 = arith.constant 0 : i32
    %c0_i32_0 = arith.constant 0 : i32
    %c0_i32_1 = arith.constant 0 : i32
    return %c0_i32, %c0_i32_0 : i32, i32
  }
  func.func @transform_2(%arg0: i32, %arg1: i32) -> (i32, i32) {
    %c0_i32 = arith.constant 0 : i32
    %c0_i32_0 = arith.constant 0 : i32
    return %c0_i32, %arg1 : i32, i32
  }
  func.func @transform_3(%arg0: i32, %arg1: i32) -> (i32, i32) {
    %c0_i32 = arith.constant 0 : i32
    %c0_i32_0 = arith.constant 0 : i32
    return %arg0, %c0_i32 : i32, i32
  }
}

</mosaic_0001>

<llo_original>
// kernel: tpu_custom_call.1
$region0: #{tpu_custom_call.1}
  #allocation0 [shape = 'u32[]', space=smem, size = 0x4, offset = 0x4, fixed_abs, tag = 'smem constant byte address 0x4 - core index']
  #allocation1 [shape = 'u32[144,128]{1,0:T(1,128)}', space=vmem, size = 0x12000, scoped, tag = 'internal scratch']
  #allocation2 [shape = 'bf16[8,128]{1,0:T(8,128)(2,1)}', space=vmem, size = 0x800, scoped, tag = 'scratch operand']
  #allocation3 [shape = 'f32[8,1]{1,0:T(8,128)}', space=vmem, size = 0x1000, scoped, tag = 'scratch operand']
  %s0 = inlined_call_operand.hbm [shape: bf16[8,128], index: 0, kind: input, shape index: {}]
  %s1 = inlined_call_operand.hbm [shape: bf16[128,128], index: 1, kind: input, shape index: {}]
  %s2 = inlined_call_operand.hbm [shape: bf16[128,128], index: 2, kind: input, shape index: {}]
  %s3 = inlined_call_operand.hbm [shape: f32[8,128], index: 3, kind: output, shape index: {}]
  %s4 = sld [smem:[#allocation0]]
  $region42: #{tpu_custom_call.1} parent=0
    _
  %s6 = ssub.s32 1, %s4
  %s7 = scalar_select 0, %s6, %s4
  $region1: #{tpu_custom_call.1} parent=0
    #allocation4 [shape = 'u8[2048]{0}', space=vmem, size = 0x800, scoped, tag = 'input window, operand 0, single buffered']
    #allocation5 [shape = 's32[1]{0}', space=sflag, size = 0x4, scoped, tag = 'scoped memory for tpu_custom_call.1']
    #allocation6 [shape = 's32[1]{0}', space=sflag, size = 0x4, scoped, tag = 'scoped memory for tpu_custom_call.1']
    #allocation7 [shape = 'u8[32768]{0}', space=vmem, size = 0x8000, scoped, tag = 'input window, operand 1, single buffered']
    #allocation8 [shape = 's32[1]{0}', space=sflag, size = 0x4, scoped, tag = 'scoped memory for tpu_custom_call.1']
    #allocation9 [shape = 'u8[32768]{0}', space=vmem, size = 0x8000, scoped, tag = 'input window, operand 2, single buffered']
    #allocation10 [shape = 'u8[4096]{0}', space=vmem, size = 0x1000, scoped, tag = 'output window, operand 0, single buffered']
    %8 = vsyncpa [#allocation5], 0
    %9 = vsyncpa [#allocation8], 0
    %10 = vsyncpa [#allocation6], 0
    // Predicated region
    $region2: #{tpu_custom_call.1} parent=1 // pred_check
      _
    $region3: #{tpu_custom_call.1} parent=1 // pred_check_branch
      %12 = sbr.rel (0) target = $region5
    $region4: #{tpu_custom_call.1} parent=1 // pred_region
      %s14 = ssub.s32 64, 64
      %15 = vsyncadd [#allocation5], %s14
      %s17 = sshll.u32 [#allocation4], 4
      %s18 = int_to_ptr.vmem [resolvable:$true] %s17
      %20 = dma.hbm_to_vmem [thread:$0]  %s0, 64, %s18, [#allocation5]
    $region5: #{tpu_custom_call.1} parent=1 // pred_fallthru
      _
    // Predicated region
    $region6: #{tpu_custom_call.1} parent=1 // pred_check
      _
    $region7: #{tpu_custom_call.1} parent=1 // pred_check_branch
      %22 = sbr.rel (0) target = $region9
    $region8: #{tpu_custom_call.1} parent=1 // pred_region
      %s24 = ssub.s32 1024, 1024
      %25 = vsyncadd [#allocation8], %s24
      %s26 = sshll.u32 [#allocation7], 4
      %s27 = int_to_ptr.vmem [resolvable:$true] %s26
      %32 = dma.hbm_to_vmem [thread:$0]  %s1, 1024, %s27, [#allocation8], 64, 64, 4
    $region9: #{tpu_custom_call.1} parent=1 // pred_fallthru
      _
    // Predicated region
    $region10: #{tpu_custom_call.1} parent=1 // pred_check
      _
    $region11: #{tpu_custom_call.1} parent=1 // pred_check_branch
      %34 = sbr.rel (0) target = $region13
    $region12: #{tpu_custom_call.1} parent=1 // pred_region
      %s36 = ssub.s32 1024, 1024
      %37 = vsyncadd [#allocation8], %s36
      %s38 = sshll.u32 [#allocation9], 4
      %s39 = int_to_ptr.vmem [resolvable:$true] %s38
      %44 = dma.hbm_to_vmem [thread:$0]  %s2, 1024, %s39, [#allocation8], 64, 64, 4
    $region13: #{tpu_custom_call.1} parent=1 // pred_fallthru
      _
    // Predicated region
    $region14: #{tpu_custom_call.1} parent=1 // pred_check
      _
    $region15: #{tpu_custom_call.1} parent=1 // pred_check_branch
      %46 = sbr.rel (0) target = $region17
    $region16: #{tpu_custom_call.1} parent=1 // pred_region
      %47 = dma.done [#allocation5], 64
    $region17: #{tpu_custom_call.1} parent=1 // pred_fallthru
      _
    // Predicated region
    $region18: #{tpu_custom_call.1} parent=1 // pred_check
      _
    $region19: #{tpu_custom_call.1} parent=1 // pred_check_branch
      %49 = sbr.rel (0) target = $region21
    $region20: #{tpu_custom_call.1} parent=1 // pred_region
      %50 = dma.done [#allocation8], 1024
    $region21: #{tpu_custom_call.1} parent=1 // pred_fallthru
      _
    // Predicated region
    $region22: #{tpu_custom_call.1} parent=1 // pred_check
      _
    $region23: #{tpu_custom_call.1} parent=1 // pred_check_branch
      %52 = sbr.rel (0) target = $region25
    $region24: #{tpu_custom_call.1} parent=1 // pred_region
      %53 = dma.done [#allocation8], 1024
    $region25: #{tpu_custom_call.1} parent=1 // pred_fallthru
      _
    %p55 = scmp.eq.s32.totalorder 0, 0
    // Predicated region
    $region26: #{tpu_custom_call.1} parent=1 // pred_check
      %p56 = pneg %p55
    $region27: #{tpu_custom_call.1} parent=1 // pred_check_branch
      %58 = sbr.rel (%p56) target = $region29
    $region28: #{tpu_custom_call.1} parent=1 // pred_region
      %v59 = vld [vmem:[#allocation4] sm:$0xf]
      %v60 = vld [vmem:[#allocation7] sm:$0xf]
      %v61 = vld [vmem:[#allocation7 + $0x4] sm:$0xf]
      %v62 = vld [vmem:[#allocation7 + $0x8] sm:$0xf]
      %v63 = vld [vmem:[#allocation7 + $0xc] sm:$0xf]
      %v64 = vld [vmem:[#allocation7 + $0x10] sm:$0xf]
      %v65 = vld [vmem:[#allocation7 + $0x14] sm:$0xf]
      %v66 = vld [vmem:[#allocation7 + $0x18] sm:$0xf]
      %v67 = vld [vmem:[#allocation7 + $0x1c] sm:$0xf]
      %v68 = vld [vmem:[#allocation7 + $0x20] sm:$0xf]
      %v69 = vld [vmem:[#allocation7 + $0x24] sm:$0xf]
      %v70 = vld [vmem:[#allocation7 + $0x28] sm:$0xf]
      %v71 = vld [vmem:[#allocation7 + $0x2c] sm:$0xf]
      %v72 = vld [vmem:[#allocation7 + $0x30] sm:$0xf]
      %v73 = vld [vmem:[#allocation7 + $0x34] sm:$0xf]
      %v74 = vld [vmem:[#allocation7 + $0x38] sm:$0xf]
      %v75 = vld [vmem:[#allocation7 + $0x3c] sm:$0xf]
      %v92 = vunpack.c.l.b16 %v60
      %v93 = vunpack.c.l.b16 %v61
      %v94 = vunpack.c.l.b16 %v62
      %v95 = vunpack.c.l.b16 %v63
      %v96 = vunpack.c.l.b16 %v64
      %v97 = vunpack.c.l.b16 %v65
      %v98 = vunpack.c.l.b16 %v66
      %v99 = vunpack.c.l.b16 %v67
      %v100 = vunpack.c.l.b16 %v68
      %v101 = vunpack.c.l.b16 %v69
      %v102 = vunpack.c.l.b16 %v70
      %v103 = vunpack.c.l.b16 %v71
      %v104 = vunpack.c.l.b16 %v72
      %v105 = vunpack.c.l.b16 %v73
      %v106 = vunpack.c.l.b16 %v74
      %v107 = vunpack.c.l.b16 %v75
      %v108 = vpack.c.b16 %v93, %v92
      %v109 = vpack.c.b16 %v95, %v94
      %v110 = vpack.c.b16 %v97, %v96
      %v111 = vpack.c.b16 %v99, %v98
      %v112 = vpack.c.b16 %v101, %v100
      %v113 = vpack.c.b16 %v103, %v102
      %v114 = vpack.c.b16 %v105, %v104
      %v115 = vpack.c.b16 %v107, %v106
      %124 = vmatprep.subr.bf16.mxu0 0
      %125 = vmatpush1.bf16.msra.mxu0 %v115
      %126 = vmatprep.subr.bf16.mxu0 0
      %127 = vmatpush1.bf16.msra.mxu0 %v114
      %128 = vmatprep.subr.bf16.mxu0 0
      %129 = vmatpush1.bf16.msra.mxu0 %v113
      %130 = vmatprep.subr.bf16.mxu0 0
      %131 = vmatpush1.bf16.msra.mxu0 %v112
      %132 = vmatprep.subr.bf16.mxu0 0
      %133 = vmatpush1.bf16.msra.mxu0 %v111
      %134 = vmatprep.subr.bf16.mxu0 0
      %135 = vmatpush1.bf16.msra.mxu0 %v110
      %136 = vmatprep.subr.bf16.mxu0 0
      %137 = vmatpush1.bf16.msra.mxu0 %v109
      %138 = vmatprep.subr.bf16.mxu0 0
      %139 = vmatpush1.bf16.msra.mxu0 %v108
      %140 = vmatprep.subr.bf16.mxu0 0
      %141 = vmatpush2.bf16.msra.mxu0 0
      %142 = vmatprep.subr.bf16.mxu0 0
      %143 = vmatpush2.bf16.msra.mxu0 0
      %144 = vmatprep.subr.bf16.mxu0 0
      %145 = vmatpush2.bf16.msra.mxu0 0
      %146 = vmatprep.subr.bf16.mxu0 0
      %147 = vmatpush2.bf16.msra.mxu0 0
      %148 = vmatprep.subr.bf16.mxu0 0
      %149 = vmatpush2.bf16.msra.mxu0 0
      %150 = vmatprep.subr.bf16.mxu0 0
      %151 = vmatpush2.bf16.msra.mxu0 0
      %152 = vmatprep.subr.bf16.mxu0 0
      %153 = vmatpush2.bf16.msra.mxu0 0
      %154 = vmatprep.subr.bf16.mxu0 0
      %155 = vmatpush2.bf16.msra.mxu0 0
      %156 = vmatprep.mubr.bf16.mxu0 0
      %157 = vmatmul.mubr.bf16.gmra.mxu0 %v59
      %v158 = vpop.f32.mrf.mxu0
      %v159 = vadd.f32 0.0, %v158
      %v160 = vpop.f32.mrf.mxu0
      %v161 = vpop.f32.mrf.mxu0
      %v162 = vpop.f32.mrf.mxu0
      %163 = vdwg.mxu0
      %v164 = vpack.c.bf16 %v159, %v159
      %165 = vst [vmem:[#allocation2] sm:$0xf] %v164
      %vm166 = vcmask 7168
      %167 = vst.msk [vmem:[#allocation3] sm:$0xff] %vm166, -inf
    $region29: #{tpu_custom_call.1} parent=1 // pred_fallthru
      _
    %v168 = vld [vmem:[#allocation2] sm:$0xf]
    %v169 = vld [vmem:[#allocation9] sm:$0xf]
    %v170 = vld [vmem:[#allocation9 + $0x4] sm:$0xf]
    %v171 = vld [vmem:[#allocation9 + $0x8] sm:$0xf]
    %v172 = vld [vmem:[#allocation9 + $0xc] sm:$0xf]
    %v173 = vld [vmem:[#allocation9 + $0x10] sm:$0xf]
    %v174 = vld [vmem:[#allocation9 + $0x14] sm:$0xf]
    %v175 = vld [vmem:[#allocation9 + $0x18] sm:$0xf]
    %v176 = vld [vmem:[#allocation9 + $0x1c] sm:$0xf]
    %v177 = vld [vmem:[#allocation9 + $0x20] sm:$0xf]
    %v178 = vld [vmem:[#allocation9 + $0x24] sm:$0xf]
    %v179 = vld [vmem:[#allocation9 + $0x28] sm:$0xf]
    %v180 = vld [vmem:[#allocation9 + $0x2c] sm:$0xf]
    %v181 = vld [vmem:[#allocation9 + $0x30] sm:$0xf]
    %v182 = vld [vmem:[#allocation9 + $0x34] sm:$0xf]
    %v183 = vld [vmem:[#allocation9 + $0x38] sm:$0xf]
    %v184 = vld [vmem:[#allocation9 + $0x3c] sm:$0xf]
    %v201 = vunpack.c.l.b16 %v169
    %v202 = vunpack.c.l.b16 %v170
    %v203 = vunpack.c.l.b16 %v171
    %v204 = vunpack.c.l.b16 %v172
    %v205 = vunpack.c.l.b16 %v173
    %v206 = vunpack.c.l.b16 %v174
    %v207 = vunpack.c.l.b16 %v175
    %v208 = vunpack.c.l.b16 %v176
    %v209 = vunpack.c.l.b16 %v177
    %v210 = vunpack.c.l.b16 %v178
    %v211 = vunpack.c.l.b16 %v179
    %v212 = vunpack.c.l.b16 %v180
    %v213 = vunpack.c.l.b16 %v181
    %v214 = vunpack.c.l.b16 %v182
    %v215 = vunpack.c.l.b16 %v183
    %v216 = vunpack.c.l.b16 %v184
    %v217 = vpack.c.b16 %v202, %v201
    %v218 = vpack.c.b16 %v204, %v203
    %v219 = vpack.c.b16 %v206, %v205
    %v220 = vpack.c.b16 %v208, %v207
    %v221 = vpack.c.b16 %v210, %v209
    %v222 = vpack.c.b16 %v212, %v211
    %v223 = vpack.c.b16 %v214, %v213
    %v224 = vpack.c.b16 %v216, %v215
    %233 = vmatprep.subr.bf16.mxu0 0
    %234 = vmatpush1.bf16.msra.mxu0 %v224
    %235 = vmatprep.subr.bf16.mxu0 0
    %236 = vmatpush1.bf16.msra.mxu0 %v223
    %237 = vmatprep.subr.bf16.mxu0 0
    %238 = vmatpush1.bf16.msra.mxu0 %v222
    %239 = vmatprep.subr.bf16.mxu0 0
    %240 = vmatpush1.bf16.msra.mxu0 %v221
    %241 = vmatprep.subr.bf16.mxu0 0
    %242 = vmatpush1.bf16.msra.mxu0 %v220
    %243 = vmatprep.subr.bf16.mxu0 0
    %244 = vmatpush1.bf16.msra.mxu0 %v219
    %245 = vmatprep.subr.bf16.mxu0 0
    %246 = vmatpush1.bf16.msra.mxu0 %v218
    %247 = vmatprep.subr.bf16.mxu0 0
    %248 = vmatpush1.bf16.msra.mxu0 %v217
    %249 = vmatprep.subr.bf16.mxu0 0
    %250 = vmatpush2.bf16.msra.mxu0 0
    %251 = vmatprep.subr.bf16.mxu0 0
    %252 = vmatpush2.bf16.msra.mxu0 0
    %253 = vmatprep.subr.bf16.mxu0 0
    %254 = vmatpush2.bf16.msra.mxu0 0
    %255 = vmatprep.subr.bf16.mxu0 0
    %256 = vmatpush2.bf16.msra.mxu0 0
    %257 = vmatprep.subr.bf16.mxu0 0
    %258 = vmatpush2.bf16.msra.mxu0 0
    %259 = vmatprep.subr.bf16.mxu0 0
    %260 = vmatpush2.bf16.msra.mxu0 0
    %261 = vmatprep.subr.bf16.mxu0 0
    %262 = vmatpush2.bf16.msra.mxu0 0
    %263 = vmatprep.subr.bf16.mxu0 0
    %264 = vmatpush2.bf16.msra.mxu0 0
    %265 = vmatprep.mubr.bf16.mxu0 0
    %266 = vmatmul.mubr.bf16.gmra.mxu0 %v168
    %v267 = vpop.f32.mrf.mxu0
    %v268 = vadd.f32 0.0, %v267
    %v269 = vpop.f32.mrf.mxu0
    %v270 = vpop.f32.mrf.mxu0
    %v271 = vpop.f32.mrf.mxu0
    %272 = vdwg.mxu0
    %v273 = vld [vmem:[#allocation3] sm:$0xff]
    %274 = vmax.xlane.f32.xlu0 %v268
    %v275 = vpop.xlane.xlu0 %274
    %v276 = vmax.f32 %v273, %v275
    %vm277 = vcmask 7168
    %278 = vst.msk [vmem:[#allocation3] sm:$0xff] %vm277, %v276
    %s279 = smul.u32 0, 128
    %s280 = sshra.s32 %s279, 7
    %s281 = sand.u32 %s279, 127
    %s282 = scalar_lea.vmem [#allocation10], %s280
    %283 = vst [vmem:[%s282] sm:$0xff] %v268
    // Predicated region
    $region30: #{tpu_custom_call.1} parent=1 // pred_check
      %p284 = pneg %p55
    $region31: #{tpu_custom_call.1} parent=1 // pred_check_branch
      %286 = sbr.rel (%p284) target = $region33
    $region32: #{tpu_custom_call.1} parent=1 // pred_region
      %v287 = vld [vmem:[#allocation10] sm:$0xff]
      %v288 = vlaneseq
      %v289 = vand.u32 %v288, 127
      %vm290 = vcmp.lt.s32.totalorder %v289, 32
      %v291 = vsel %vm290, %v287, -inf
      %292 = vmax.xlane.f32.xlu0 %v291
      %v293 = vpop.xlane.xlu0 %292
      %v294 = vsub.f32 %v291, %v293
      %v295 = vmul.f32 %v294, 1.442695
      %v296 = vpow.pop %v295
      %297 = vadd.xlane.f32.xlu0 %v296
      %v298 = vpop.xlane.xlu0 %297
      %v299 = vrcp.pop %v298
      %v300 = vmul.f32 %v298, %v299
      %v301 = vsub.f32 2.0, %v300
      %v302 = vmul.f32 %v299, %v301
      %v303 = vmul.f32 %v296, %v302
      %304 = vst [vmem:[#allocation10] sm:$0xff] %v303
    $region33: #{tpu_custom_call.1} parent=1 // pred_fallthru
      _
    // Predicated region
    $region34: #{tpu_custom_call.1} parent=1 // pred_check
      _
    $region35: #{tpu_custom_call.1} parent=1 // pred_check_branch
      %306 = sbr.rel (0) target = $region37
    $region36: #{tpu_custom_call.1} parent=1 // pred_region
      %s308 = ssub.s32 128, 128
      %309 = vsyncadd [#allocation6], %s308
      %s311 = sshll.u32 [#allocation10], 4
      %s312 = int_to_ptr.vmem [resolvable:$true] %s311
      %314 = dma.vmem_to_hbm [thread:$0]  %s312, 128, %s3, [#allocation6]
    $region37: #{tpu_custom_call.1} parent=1 // pred_fallthru
      _
    // Predicated region
    $region38: #{tpu_custom_call.1} parent=1 // pred_check
      _
    $region39: #{tpu_custom_call.1} parent=1 // pred_check_branch
      %316 = sbr.rel (0) target = $region41
    $region40: #{tpu_custom_call.1} parent=1 // pred_region
      %317 = dma.done [#allocation6], 128
    $region41: #{tpu_custom_call.1} parent=1 // pred_fallthru
      _
    %318 = vsyncpa [#allocation5], 1
    %319 = vsyncpa [#allocation8], 1
    %320 = vsyncpa [#allocation6], 1

</llo_original>
